<compile_context>
chip_gen: v7x
topology: tpu7x:2x2x1
jax: 0.10.0
libtpu: 0.0.40
codegen_flags: <defaults>
</compile_context>

<pallas_src>
import jax
import jax.numpy as jnp
from jax.experimental import pallas as pl
from jax.experimental.pallas import tpu as pltpu


K_THRESHOLD = 0.1
_TARGET_BLOCK_BYTES = 2 * 1024 * 1024  # ~2 MiB per block


def _sparse_kernel(x_ref, o_ref):
    x = x_ref[...]
    # torch.where(X < k, 0, X)  -- pure VPU work, fully hidden under the DMAs.
    o_ref[...] = jnp.where(x < jnp.asarray(K_THRESHOLD, x.dtype),
                           jnp.zeros_like(x), x)


def _sparse_forward_impl(x):
    orig_shape = x.shape
    dtype = x.dtype
    n = x.size
    itemsize = jnp.dtype(dtype).itemsize
    # Minimum sublane multiple per dtype packing (8 for f32, 16 bf16, 32 i8).
    sub = max(8, 32 // itemsize)

    # --- Choose a lane-dense 2-D view of the flat data ---------------------
    lane = None
    for cand in (8192, 4096, 2048, 1024, 512, 256, 128):
        if n % cand == 0:
            lane = cand
            break

    if lane is None:
        # Odd flat size: pad up to a multiple of 128 lanes.  Rare path; jit
        # keeps the pad/slice fused around the pallas_call.
        lane = 128
        n_pad = pl.cdiv(n, lane) * lane
        flat = jnp.zeros((n_pad,), dtype).at[:n].set(x.reshape(-1))
        padded = True
    else:
        n_pad = n
        flat = x.reshape(-1)          # metadata-only reshape, no HBM copy
        padded = False

    rows = n_pad // lane
    x2d = flat.reshape(rows, lane)

    # --- Pick tile_rows targeting ~2 MiB per block --------------------------
    target_rows = max(1, _TARGET_BLOCK_BYTES // (lane * itemsize))
    tile_rows = min(rows, max(sub, (target_rows // sub) * sub))
    # If a single block would cover the input but we can split, make >=2 grid
    # steps so the "parallel" axis can shard across v7x's two TensorCores.
    if pl.cdiv(rows, tile_rows) < 2 and rows >= 2 * sub:
        tile_rows = max(sub, ((rows // 2) // sub) * sub)

    num_blocks = pl.cdiv(rows, tile_rows)

    out2d = pl.pallas_call(
        _sparse_kernel,
        out_shape=jax.ShapeDtypeStruct((rows, lane), dtype),
        grid=(num_blocks,),
        in_specs=[pl.BlockSpec((tile_rows, lane), lambda i: (i, 0))],
        out_specs=pl.BlockSpec((tile_rows, lane), lambda i: (i, 0)),
        compiler_params=pltpu.CompilerParams(
            dimension_semantics=("parallel",),
            vmem_limit_bytes=32 * 1024 * 1024,
        ),
    )(x2d)

    if padded:
        out = out2d.reshape(-1)[:n].reshape(orig_shape)
    else:
        out = out2d.reshape(orig_shape)
    return out


sparse_forward = jax.jit(_sparse_forward_impl)


if __name__ == "__main__":
    key = jax.random.PRNGKey(0)

    # Small NCHW-style input consistent with the module.
    x = jax.random.normal(key, (2, 4, 16, 16), dtype=jnp.float32)
    y = jax.block_until_ready(sparse_forward(x))
    y_ref = jnp.where(x < K_THRESHOLD, 0.0, x)
    assert y.shape == x.shape and y.dtype == x.dtype
    assert bool(jnp.all(y == y_ref))

    # Odd-sized input exercises the padded fallback path.
    x2 = jax.random.normal(jax.random.PRNGKey(1), (3, 5, 7), dtype=jnp.float32)
    y2 = jax.block_until_ready(sparse_forward(x2))
    y2_ref = jnp.where(x2 < K_THRESHOLD, 0.0, x2)
    assert y2.shape == x2.shape and bool(jnp.all(y2 == y2_ref))

    # bf16 path (different sublane packing) for good measure.
    x3 = jax.random.normal(jax.random.PRNGKey(2), (2, 8, 32, 32),
                           dtype=jnp.bfloat16)
    y3 = jax.block_until_ready(sparse_forward(x3))
    y3_ref = jnp.where(x3 < jnp.bfloat16(K_THRESHOLD), jnp.bfloat16(0), x3)
    assert y3.shape == x3.shape and y3.dtype == x3.dtype
    assert bool(jnp.all(y3 == y3_ref))

    print("KERNEL_OK")
</pallas_src>

<mosaic_0001>
module attributes {stable_mosaic.version = 11 : i64} {
  func.func @_sparse_kernel(%arg0: i32, %arg1: memref<1x2048xf32, #tpu.memory_space<vmem>>, %arg2: memref<1x2048xf32, #tpu.memory_space<vmem>>) attributes {dimension_semantics = [#tpu.dimension_semantics<parallel>], iteration_bounds = array<i64: 1>, scalar_prefetch = 0 : i64, scratch_operands = 0 : i64, tpu.core_type = #tpu.core_type<tc>, window_params = [{transform_indices = @transform_0, window_bounds = array<i64: 1, 2048>}, {transform_indices = @transform_1, window_bounds = array<i64: 1, 2048>}]} {
    %c0 = arith.constant 0 : index
    %c0_0 = arith.constant 0 : index
    %0 = vector.load %arg1[%c0, %c0_0] : memref<1x2048xf32, #tpu.memory_space<vmem>>, vector<1x2048xf32>
    %cst = arith.constant 1.000000e-01 : f32
    %1 = vector.broadcast %cst : f32 to vector<1x2048xf32>
    %2 = arith.cmpf olt, %0, %1 : vector<1x2048xf32>
    %cst_1 = arith.constant 0.000000e+00 : f32
    %3 = vector.broadcast %cst_1 : f32 to vector<1x2048xf32>
    %4 = arith.select %2, %3, %0 : vector<1x2048xi1>, vector<1x2048xf32>
    %c0_2 = arith.constant 0 : index
    %c0_3 = arith.constant 0 : index
    %5 = vector.load %arg2[%c0_2, %c0_3] : memref<1x2048xf32, #tpu.memory_space<vmem>>, vector<1x2048xf32>
    tpu.vector_store %arg2[%c0_2, %c0_3], %4 {strides = array<i32>} : memref<1x2048xf32, #tpu.memory_space<vmem>>, vector<1x2048xf32>,
    return
  }
  func.func @transform_0(%arg0: i32) -> (i32, i32) {
    %c0_i32 = arith.constant 0 : i32
    %c0_i32_0 = arith.constant 0 : i32
    return %arg0, %c0_i32 : i32, i32
  }
  func.func @transform_1(%arg0: i32) -> (i32, i32) {
    %c0_i32 = arith.constant 0 : i32
    %c0_i32_0 = arith.constant 0 : i32
    return %arg0, %c0_i32 : i32, i32
  }
}

</mosaic_0001>

<llo_original>
// kernel: _sparse_forward_impl.1
$region0: #{_sparse_forward_impl.1}
  #allocation0 [shape = 'u32[]', space=smem, size = 0x4, offset = 0x4, fixed_abs, tag = 'smem constant byte address 0x4 - core index']
  #allocation1 [shape = 'u32[144,128]{1,0:T(1,128)}', space=vmem, size = 0x12000, scoped, tag = 'internal scratch']
  %s0 = inlined_call_operand.vmem [shape: f32[1,2048], index: 0, kind: input, shape index: {}]
  %s1 = inlined_call_operand.vmem [shape: f32[1,2048], index: 1, kind: output, shape index: {}]
  %s2 = sld [smem:[#allocation0]]
  $region14: #{_sparse_forward_impl.1} parent=0
    _
  %s4 = ssub.s32 1, %s2
  %s5 = scalar_select 0, %s4, %s2
  // Predicated region
  $region2: #{_sparse_forward_impl.1} parent=0 // pred_check
    _
  $region3: #{_sparse_forward_impl.1} parent=0 // pred_check_branch
    %7 = sbr.rel (0) target = $region5
  $region4: #{_sparse_forward_impl.1} parent=0 // pred_region
    _
  $region5: #{_sparse_forward_impl.1} parent=0 // pred_fallthru
    _
  %v8 = vld [vmem:[%s0] sm:$0xff]
  %v9 = vld [vmem:[%s0 + $0x8] sm:$0xff]
  %vm10 = vcmp.lt.f32.partialorder %v8, 0.1
  %vm11 = vcmp.lt.f32.partialorder %v9, 0.1
  %v12 = vsel %vm10, 0.0, %v8
  %v13 = vsel %vm11, 0.0, %v9
  %14 = vst [vmem:[%s1] sm:$0xff] %v12
  %15 = vst [vmem:[%s1 + $0x8] sm:$0xff] %v13
  // Predicated region
  $region6: #{_sparse_forward_impl.1} parent=0 // pred_check
    _
  $region7: #{_sparse_forward_impl.1} parent=0 // pred_check_branch
    %17 = sbr.rel (0) target = $region9
  $region8: #{_sparse_forward_impl.1} parent=0 // pred_region
    _
  $region9: #{_sparse_forward_impl.1} parent=0 // pred_fallthru
    _
  // Predicated region
  $region10: #{_sparse_forward_impl.1} parent=0 // pred_check
    _
  $region11: #{_sparse_forward_impl.1} parent=0 // pred_check_branch
    %19 = sbr.rel (0) target = $region13
  $region12: #{_sparse_forward_impl.1} parent=0 // pred_region
    _
  $region13: #{_sparse_forward_impl.1} parent=0 // pred_fallthru
    _

</llo_original>
